<compile_context>
chip_gen: v5e
topology: v5e:2x2
jax: 0.10.0
libtpu: 0.0.40
codegen_flags: <defaults>
</compile_context>

<pallas_src>
import functools

import jax
import jax.numpy as jnp
from jax.experimental import pallas as pl
from jax.experimental.pallas import tpu as pltpu


def _round_up(n, m):
    return ((n + m - 1) // m) * m


def _simple_nn_kernel(xt_ref, w1t_ref, b1_ref, w2t_ref, b2_ref, w3_ref, b3_ref,
                      ot_ref, *, bf16_act):
    xt = xt_ref[...]                                                     # (F, TM) bf16

    # fc1 + ReLU   (dropout == identity in eval mode)
    h1 = jnp.dot(w1t_ref[...], xt, preferred_element_type=jnp.float32)  # (64, TM) f32
    if bf16_act:
        # v6e/v7x: bf16 bias+ReLU (native bf16 VALU) — one cast, half the
        # intermediate vld/vst traffic.
        h1 = jnp.maximum(h1.astype(jnp.bfloat16) + b1_ref[...], 0)      # (64, TM) bf16
    else:
        # v5e: f32 bias+ReLU (no bf16 VALU), single cast for the next MXU pass.
        h1 = jnp.maximum(h1 + b1_ref[...], 0.0).astype(jnp.bfloat16)

    # fc2 + ReLU   (dropout == identity in eval mode).  h2 stays f32: fc3
    # below is elementwise, so no bf16 re-cast is ever materialized.
    h2 = jnp.dot(w2t_ref[...], h1, preferred_element_type=jnp.float32)  # (32, TM) f32
    h2 = jnp.maximum(h2 + b2_ref[...], 0.0)

    # fc3 off the MXU: y[b] = sum_k w3[k] * h2[k, b]  — VPU broadcast-multiply
    # plus a 32->1 sublane reduce on the (idle) XLU, instead of a 1-row MXU
    # pass that pays full result cadence at <1% row utilization.
    y = jnp.sum(w3_ref[...] * h2, axis=0, keepdims=True) + b3_ref[...]  # (1, TM) f32
    ot_ref[...] = y.astype(ot_ref.dtype)


def simple_nn_forward(x, params, *, tm=8192, bf16_act=True):
    """x: (B, input_size) float32.  params: dict of w1,b1,w2,b2,w3,b3.

    tm:       requested batch-tile (lane) width; the actual tile is re-derived
              so the last tile is never mostly padding and the grid has >= 2
              steps whenever possible (both v7x TensorCores get work).
    bf16_act: bf16 bias+ReLU for h1 (v6e/v7x).  Set False on v5e (no bf16 VALU).
    """
    B, F = x.shape

    # --- batch tiling: minimal 128-alignment padding, no mostly-empty last
    # tile, and >= 2 grid steps when B >= 256 (megacore / v7x dual TC).
    b_pad = _round_up(B, 128)
    max_steps = b_pad // 128
    min_steps = min(2, max_steps)
    tm_req = max(128, tm)
    grid = min(max(pl.cdiv(b_pad, tm_req), min_steps), max_steps)
    tm = _round_up(pl.cdiv(b_pad, grid), 128)
    b_pad = tm * grid                                # overshoot < 128*grid rows

    # Lane-dense, bf16 activations: batch on the 128-lane axis.  Cast to bf16
    # first so the pad/transpose layout pass moves half the bytes.
    xt = jnp.pad(x.astype(jnp.bfloat16), ((0, b_pad - B), (0, 0))).T     # (F, b_pad)

    # Weights transposed to (out, in), bf16, fully VMEM-resident (~12 KB total,
    # constant index_maps -> DMA'd once).
    w1t = params["w1"].T.astype(jnp.bfloat16)                            # (64, F)
    w2t = params["w2"].T.astype(jnp.bfloat16)                            # (32, 64)
    w3 = params["w3"].astype(jnp.float32)                                # (32, 1) off-MXU
    b1 = params["b1"].reshape(-1, 1).astype(
        jnp.bfloat16 if bf16_act else jnp.float32)                       # (64, 1)
    b2 = params["b2"].reshape(-1, 1).astype(jnp.float32)                 # (32, 1)
    b3 = params["b3"].reshape(-1, 1).astype(jnp.float32)                 # (1, 1)

    resident = lambda arr: pl.BlockSpec(arr.shape, lambda i: (0, 0))

    flops = 2 * b_pad * (F * 64 + 64 * 32 + 32 * 1)
    bytes_accessed = (b_pad * F * 2) + (b_pad * 4) \
        + 2 * (F * 64 + 64 * 32) + 4 * (64 + 32 + 32 + 1 + 1)

    out_t = pl.pallas_call(
        functools.partial(_simple_nn_kernel, bf16_act=bf16_act),
        out_shape=jax.ShapeDtypeStruct((1, b_pad), jnp.float32),
        grid_spec=pl.GridSpec(
            grid=(grid,),
            in_specs=[
                pl.BlockSpec((F, tm), lambda i: (0, i)),     # x^T tile (streamed)
                resident(w1t), resident(b1),
                resident(w2t), resident(b2),
                resident(w3), resident(b3),
            ],
            out_specs=pl.BlockSpec((1, tm), lambda i: (0, i)),   # lane-dense output
        ),
        compiler_params=pltpu.CompilerParams(
            dimension_semantics=("parallel",),
            vmem_limit_bytes=32 * 1024 * 1024),
        cost_estimate=pl.CostEstimate(
            flops=flops, transcendentals=0, bytes_accessed=bytes_accessed),
    )(xt, w1t, b1, w2t, b2, w3, b3)

    # Layout plumbing back to PyTorch's (B, 1).
    return out_t[0, :B].reshape(B, 1)


def init_params(key, input_size):
    """Deterministic init mimicking PyTorch Linear default (uniform +/- 1/sqrt(fan_in))."""
    def linear(k, fan_in, fan_out):
        kw, kb = jax.random.split(k)
        bound = 1.0 / jnp.sqrt(fan_in)
        w = jax.random.uniform(kw, (fan_in, fan_out), jnp.float32, -bound, bound)
        b = jax.random.uniform(kb, (fan_out,), jnp.float32, -bound, bound)
        return w, b

    k1, k2, k3 = jax.random.split(key, 3)
    w1, b1 = linear(k1, input_size, 64)
    w2, b2 = linear(k2, 64, 32)
    w3, b3 = linear(k3, 32, 1)
    return dict(w1=w1, b1=b1, w2=w2, b2=b2, w3=w3, b3=b3)


if __name__ == "__main__":
    key = jax.random.PRNGKey(0)
    kx, kp = jax.random.split(key)

    batch, input_size = 8, 16
    x = jax.random.normal(kx, (batch, input_size), jnp.float32)
    params = init_params(kp, input_size)

    out = jax.block_until_ready(simple_nn_forward(x, params))

    # Pure-JAX reference using the same precision recipe (bf16 MXU inputs,
    # f32 accumulation, bf16 h1 bias+ReLU, f32 fc2 bias/ReLU and fc3).
    bf16 = lambda a: a.astype(jnp.bfloat16)
    h1 = jnp.dot(bf16(x), bf16(params["w1"]), preferred_element_type=jnp.float32)
    h1 = jnp.maximum(bf16(h1) + bf16(params["b1"]), 0)
    h2 = jnp.dot(h1, bf16(params["w2"]), preferred_element_type=jnp.float32)
    h2 = jnp.maximum(h2 + params["b2"], 0.0)
    ref = (h2 @ params["w3"] + params["b3"]).reshape(batch, 1)

    assert out.shape == (batch, 1)
    assert jnp.allclose(out, ref, atol=1e-2, rtol=1e-2), float(
        jnp.max(jnp.abs(out - ref)))

    print("KERNEL_OK")
</pallas_src>

<mosaic_0001>
module attributes {stable_mosaic.version = 11 : i64} {
  func.func @_simple_nn_kernel(%arg0: i32, %arg1: memref<16x128xbf16, #tpu.memory_space<vmem>>, %arg2: memref<64x16xbf16, #tpu.memory_space<vmem>>, %arg3: memref<64x1xbf16, #tpu.memory_space<vmem>>, %arg4: memref<32x64xbf16, #tpu.memory_space<vmem>>, %arg5: memref<32x1xf32, #tpu.memory_space<vmem>>, %arg6: memref<32x1xf32, #tpu.memory_space<vmem>>, %arg7: memref<1x1xf32, #tpu.memory_space<vmem>>, %arg8: memref<1x128xf32, #tpu.memory_space<vmem>>) attributes {dimension_semantics = [#tpu.dimension_semantics<parallel>], iteration_bounds = array<i64: 1>, scalar_prefetch = 0 : i64, scratch_operands = 0 : i64, tpu.core_type = #tpu.core_type<tc>, window_params = [{transform_indices = @transform_0, window_bounds = array<i64: 16, 128>}, {pipeline_mode = #tpu.pipeline_mode<synchronous>, transform_indices = @transform_1, window_bounds = array<i64: 64, 16>}, {pipeline_mode = #tpu.pipeline_mode<synchronous>, transform_indices = @transform_2, window_bounds = array<i64: 64, 1>}, {pipeline_mode = #tpu.pipeline_mode<synchronous>, transform_indices = @transform_3, window_bounds = array<i64: 32, 64>}, {pipeline_mode = #tpu.pipeline_mode<synchronous>, transform_indices = @transform_4, window_bounds = array<i64: 32, 1>}, {pipeline_mode = #tpu.pipeline_mode<synchronous>, transform_indices = @transform_5, window_bounds = array<i64: 32, 1>}, {pipeline_mode = #tpu.pipeline_mode<synchronous>, transform_indices = @transform_6, window_bounds = array<i64: 1, 1>}, {transform_indices = @transform_7, window_bounds = array<i64: 1, 128>}]} {
    %c0 = arith.constant 0 : index
    %c0_0 = arith.constant 0 : index
    %0 = vector.load %arg1[%c0, %c0_0] : memref<16x128xbf16, #tpu.memory_space<vmem>>, vector<16x128xbf16>
    %c0_1 = arith.constant 0 : index
    %c0_2 = arith.constant 0 : index
    %1 = vector.load %arg2[%c0_1, %c0_2] : memref<64x16xbf16, #tpu.memory_space<vmem>>, vector<64x16xbf16>
    %cst = arith.constant dense<0.000000e+00> : vector<64x128xf32>
    %2 = tpu.matmul %1, %0, %cst {dimension_numbers = #tpu.dot_dimension_numbers<[1], [0], [0], [1], [0, 0, 1, 1], [], []>} : vector<64x16xbf16>, vector<16x128xbf16>, vector<64x128xf32> -> vector<64x128xf32>
    %3 = arith.truncf %2 : vector<64x128xf32> to vector<64x128xbf16>
    %c0_3 = arith.constant 0 : index
    %c0_4 = arith.constant 0 : index
    %4 = vector.load %arg3[%c0_3, %c0_4] : memref<64x1xbf16, #tpu.memory_space<vmem>>, vector<64x1xbf16>
    %5 = vector.broadcast %4 : vector<64x1xbf16> to vector<64x128xbf16>
    %6 = arith.addf %3, %5 : vector<64x128xbf16>
    %cst_5 = arith.constant 0.000000e+00 : bf16
    %7 = vector.broadcast %cst_5 : bf16 to vector<64x128xbf16>
    %8 = arith.maximumf %6, %7 : vector<64x128xbf16>
    %c0_6 = arith.constant 0 : index
    %c0_7 = arith.constant 0 : index
    %9 = vector.load %arg4[%c0_6, %c0_7] : memref<32x64xbf16, #tpu.memory_space<vmem>>, vector<32x64xbf16>
    %cst_8 = arith.constant dense<0.000000e+00> : vector<32x128xf32>
    %10 = tpu.matmul %9, %8, %cst_8 {dimension_numbers = #tpu.dot_dimension_numbers<[1], [0], [0], [1], [0, 0, 1, 1], [], []>} : vector<32x64xbf16>, vector<64x128xbf16>, vector<32x128xf32> -> vector<32x128xf32>
    %c0_9 = arith.constant 0 : index
    %c0_10 = arith.constant 0 : index
    %11 = vector.load %arg5[%c0_9, %c0_10] : memref<32x1xf32, #tpu.memory_space<vmem>>, vector<32x1xf32>
    %12 = vector.broadcast %11 : vector<32x1xf32> to vector<32x128xf32>
    %13 = arith.addf %10, %12 : vector<32x128xf32>
    %cst_11 = arith.constant 0.000000e+00 : f32
    %14 = vector.broadcast %cst_11 : f32 to vector<32x128xf32>
    %15 = arith.maximumf %13, %14 : vector<32x128xf32>
    %c0_12 = arith.constant 0 : index
    %c0_13 = arith.constant 0 : index
    %16 = vector.load %arg6[%c0_12, %c0_13] : memref<32x1xf32, #tpu.memory_space<vmem>>, vector<32x1xf32>
    %17 = vector.broadcast %16 : vector<32x1xf32> to vector<32x128xf32>
    %18 = arith.mulf %17, %15 : vector<32x128xf32>
    %cst_14 = arith.constant dense<0.000000e+00> : vector<128xf32>
    %19 = vector.multi_reduction <add>, %18, %cst_14 [0] : vector<32x128xf32> to vector<128xf32>
    %20 = vector.shape_cast %19 : vector<128xf32> to vector<1x128xf32>
    %c0_15 = arith.constant 0 : index
    %c0_16 = arith.constant 0 : index
    %21 = vector.load %arg7[%c0_15, %c0_16] : memref<1x1xf32, #tpu.memory_space<vmem>>, vector<1x1xf32>
    %22 = vector.broadcast %21 : vector<1x1xf32> to vector<1x128xf32>
    %23 = arith.addf %20, %22 : vector<1x128xf32>
    %c0_17 = arith.constant 0 : index
    %c0_18 = arith.constant 0 : index
    %24 = vector.load %arg8[%c0_17, %c0_18] : memref<1x128xf32, #tpu.memory_space<vmem>>, vector<1x128xf32>
    tpu.vector_store %arg8[%c0_17, %c0_18], %23 {strides = array<i32>} : memref<1x128xf32, #tpu.memory_space<vmem>>, vector<1x128xf32>,
    return
  }
  func.func @transform_0(%arg0: i32) -> (i32, i32) {
    %c0_i32 = arith.constant 0 : i32
    %c0_i32_0 = arith.constant 0 : i32
    return %c0_i32, %arg0 : i32, i32
  }
  func.func @transform_1(%arg0: i32) -> (i32, i32) {
    %c0_i32 = arith.constant 0 : i32
    %c0_i32_0 = arith.constant 0 : i32
    %c0_i32_1 = arith.constant 0 : i32
    return %c0_i32, %c0_i32_0 : i32, i32
  }
  func.func @transform_2(%arg0: i32) -> (i32, i32) {
    %c0_i32 = arith.constant 0 : i32
    %c0_i32_0 = arith.constant 0 : i32
    %c0_i32_1 = arith.constant 0 : i32
    return %c0_i32, %c0_i32_0 : i32, i32
  }
  func.func @transform_3(%arg0: i32) -> (i32, i32) {
    %c0_i32 = arith.constant 0 : i32
    %c0_i32_0 = arith.constant 0 : i32
    %c0_i32_1 = arith.constant 0 : i32
    return %c0_i32, %c0_i32_0 : i32, i32
  }
  func.func @transform_4(%arg0: i32) -> (i32, i32) {
    %c0_i32 = arith.constant 0 : i32
    %c0_i32_0 = arith.constant 0 : i32
    %c0_i32_1 = arith.constant 0 : i32
    return %c0_i32, %c0_i32_0 : i32, i32
  }
  func.func @transform_5(%arg0: i32) -> (i32, i32) {
    %c0_i32 = arith.constant 0 : i32
    %c0_i32_0 = arith.constant 0 : i32
    %c0_i32_1 = arith.constant 0 : i32
    return %c0_i32, %c0_i32_0 : i32, i32
  }
  func.func @transform_6(%arg0: i32) -> (i32, i32) {
    %c0_i32 = arith.constant 0 : i32
    %c0_i32_0 = arith.constant 0 : i32
    %c0_i32_1 = arith.constant 0 : i32
    return %c0_i32, %c0_i32_0 : i32, i32
  }
  func.func @transform_7(%arg0: i32) -> (i32, i32) {
    %c0_i32 = arith.constant 0 : i32
    %c0_i32_0 = arith.constant 0 : i32
    return %c0_i32, %arg0 : i32, i32
  }
}

</mosaic_0001>

<llo_original>
// kernel: tpu_custom_call.1
$region0: #{tpu_custom_call.1}
  #allocation0 [shape = 'u32[]', space=smem, size = 0x4, offset = 0x4, fixed_abs, tag = 'smem constant byte address 0x4 - core index']
  #allocation1 [shape = 'u32[72,128]{1,0:T(1,128)}', space=vmem, size = 0x9000, scoped, tag = 'internal scratch']
  #allocation2 [shape = 'f32[1,1]{1,0:T(1,128)S(1)}', space=vmem, size = 0x200, scoped, tag = 'scoped memory for tpu_custom_call.1']
  %s0 = inlined_call_operand.vmem [shape: bf16[16,128], index: 0, kind: input, shape index: {}]
  %s1 = inlined_call_operand.vmem [shape: bf16[64,16], index: 1, kind: input, shape index: {}]
  %s2 = inlined_call_operand.vmem [shape: bf16[64,1], index: 2, kind: input, shape index: {}]
  %s3 = inlined_call_operand.vmem [shape: bf16[32,64], index: 3, kind: input, shape index: {}]
  %s4 = inlined_call_operand.vmem [shape: f32[32,1], index: 4, kind: input, shape index: {}]
  %s5 = inlined_call_operand.vmem [shape: f32[32,1], index: 5, kind: input, shape index: {}]
  %s6 = inlined_call_operand.<no memory space> [shape: f32[1,1], index: 6, kind: input, shape index: {}]
  %s7 = inlined_call_operand.hbm [shape: f32[1,128], index: 7, kind: output, shape index: {}]
  %s8 = sld [smem:[#allocation0]]
  $region38: #{tpu_custom_call.1} parent=0
    _
  %s10 = ssub.s32 1, %s8
  %s11 = scalar_select 0, %s10, %s8
  %v12 = vstv %s6
  %13 = vst [vmem:[#allocation2] sm:$0x1] %v12
  $region1: #{tpu_custom_call.1} parent=0
    #allocation3 [shape = 'u8[512]{0}', space=vmem, size = 0x400, scoped, tag = 'output window, operand 0, single buffered']
    #allocation4 [shape = 's32[1]{0}', space=sflag, size = 0x4, scoped, tag = 'scoped memory for tpu_custom_call.1']
    %14 = vsyncpa [#allocation4], 0
    // Predicated region
    $region2: #{tpu_custom_call.1} parent=1 // pred_check
      _
    $region3: #{tpu_custom_call.1} parent=1 // pred_check_branch
      %16 = sbr.rel (0) target = $region5
    $region4: #{tpu_custom_call.1} parent=1 // pred_region
      _
    $region5: #{tpu_custom_call.1} parent=1 // pred_fallthru
      _
    // Predicated region
    $region6: #{tpu_custom_call.1} parent=1 // pred_check
      _
    $region7: #{tpu_custom_call.1} parent=1 // pred_check_branch
      %18 = sbr.rel (0) target = $region9
    $region8: #{tpu_custom_call.1} parent=1 // pred_region
      _
    $region9: #{tpu_custom_call.1} parent=1 // pred_fallthru
      _
    // Predicated region
    $region10: #{tpu_custom_call.1} parent=1 // pred_check
      _
    $region11: #{tpu_custom_call.1} parent=1 // pred_check_branch
      %20 = sbr.rel (0) target = $region13
    $region12: #{tpu_custom_call.1} parent=1 // pred_region
      _
    $region13: #{tpu_custom_call.1} parent=1 // pred_fallthru
      _
    // Predicated region
    $region14: #{tpu_custom_call.1} parent=1 // pred_check
      _
    $region15: #{tpu_custom_call.1} parent=1 // pred_check_branch
      %22 = sbr.rel (0) target = $region17
    $region16: #{tpu_custom_call.1} parent=1 // pred_region
      _
    $region17: #{tpu_custom_call.1} parent=1 // pred_fallthru
      _
    // Predicated region
    $region18: #{tpu_custom_call.1} parent=1 // pred_check
      _
    $region19: #{tpu_custom_call.1} parent=1 // pred_check_branch
      %24 = sbr.rel (0) target = $region21
    $region20: #{tpu_custom_call.1} parent=1 // pred_region
      _
    $region21: #{tpu_custom_call.1} parent=1 // pred_fallthru
      _
    // Predicated region
    $region22: #{tpu_custom_call.1} parent=1 // pred_check
      _
    $region23: #{tpu_custom_call.1} parent=1 // pred_check_branch
      %26 = sbr.rel (0) target = $region25
    $region24: #{tpu_custom_call.1} parent=1 // pred_region
      _
    $region25: #{tpu_custom_call.1} parent=1 // pred_fallthru
      _
    // Predicated region
    $region26: #{tpu_custom_call.1} parent=1 // pred_check
      _
    $region27: #{tpu_custom_call.1} parent=1 // pred_check_branch
      %28 = sbr.rel (0) target = $region29
    $region28: #{tpu_custom_call.1} parent=1 // pred_region
      _
    $region29: #{tpu_custom_call.1} parent=1 // pred_fallthru
      _
    %v30 = vld [vmem:[%s0] sm:$0xf]
    %v31 = vld [vmem:[%s0 + $0x4] sm:$0xf]
    %v32 = vld [vmem:[%s1] sm:$0xf]
    %v33 = vld [vmem:[%s1 + $0x4] sm:$0xf]
    %v34 = vld [vmem:[%s1 + $0x8] sm:$0xf]
    %v35 = vld [vmem:[%s1 + $0xc] sm:$0xf]
    %v36 = vld [vmem:[%s1 + $0x10] sm:$0xf]
    %v37 = vld [vmem:[%s1 + $0x14] sm:$0xf]
    %v38 = vld [vmem:[%s1 + $0x18] sm:$0xf]
    %v39 = vld [vmem:[%s1 + $0x1c] sm:$0xf]
    %v48 = vunpack.c.l.b16 %v32
    %v49 = vunpack.c.l.b16 %v33
    %v50 = vunpack.c.l.b16 %v34
    %v51 = vunpack.c.l.b16 %v35
    %v52 = vunpack.c.l.b16 %v36
    %v53 = vunpack.c.l.b16 %v37
    %v54 = vunpack.c.l.b16 %v38
    %v55 = vunpack.c.l.b16 %v39
    %v56 = vpack.c.b16 %v49, %v48
    %v57 = vpack.c.b16 %v51, %v50
    %v58 = vpack.c.b16 %v53, %v52
    %v59 = vpack.c.b16 %v55, %v54
    %v62 = vunpack.c.l.b16 %v30
    %v63 = vunpack.c.l.b16 %v31
    %v64 = vpack.c.b16 %v63, %v62
    %vm66 = vcmask 130048
    %v68 = vsel %vm66, %v56, 0
    %v71 = vsel %vm66, %v57, 0
    %v74 = vsel %vm66, %v58, 0
    %v77 = vsel %vm66, %v59, 0
    %79 = vmatpush.bf16.msra.mxu0 0
    %80 = vmatpush.bf16.msra.mxu0 0
    %81 = vmatpush.bf16.msra.mxu0 0
    %82 = vmatpush.bf16.msra.mxu0 0
    %83 = vmatpush.bf16.msra.mxu0 0
    %84 = vmatpush.bf16.msra.mxu0 0
    %85 = vmatpush.bf16.msra.mxu0 0
    %86 = vmatpush.bf16.msra.mxu0 %v64
    %87 = vmatmul.bf16.gmra.mxu0 %v68
    %v88 = vpop.f32.mrf.mxu0
    %v89 = vadd.f32 0.0, %v88
    %v90 = vpop.f32.mrf.mxu0
    %v91 = vadd.f32 0.0, %v90
    %92 = vmatmul.bf16.gmra.mxu0 %v71
    %v93 = vpop.f32.mrf.mxu0
    %v94 = vadd.f32 0.0, %v93
    %v95 = vpop.f32.mrf.mxu0
    %v96 = vadd.f32 0.0, %v95
    %97 = vmatmul.bf16.gmra.mxu0 %v74
    %v98 = vpop.f32.mrf.mxu0
    %v99 = vadd.f32 0.0, %v98
    %v100 = vpop.f32.mrf.mxu0
    %v101 = vadd.f32 0.0, %v100
    %102 = vmatmul.bf16.gmra.mxu0 %v77
    %v103 = vpop.f32.mrf.mxu0
    %v104 = vadd.f32 0.0, %v103
    %v105 = vpop.f32.mrf.mxu0
    %v106 = vadd.f32 0.0, %v105
    %107 = vdwg.mxu0
    %v108 = vpack.c.bf16 %v89, %v89
    %v109 = vpack.c.bf16 %v91, %v91
    %v110 = vpack.c.bf16 %v94, %v94
    %v111 = vpack.c.bf16 %v96, %v96
    %v112 = vpack.c.bf16 %v99, %v99
    %v113 = vpack.c.bf16 %v101, %v101
    %v114 = vpack.c.bf16 %v104, %v104
    %v115 = vpack.c.bf16 %v106, %v106
    %v116 = vld [vmem:[%s2] sm:$0xf]
    %v117 = vld [vmem:[%s2 + $0x4] sm:$0xf]
    %v118 = vld [vmem:[%s2 + $0x8] sm:$0xf]
    %v119 = vld [vmem:[%s2 + $0xc] sm:$0xf]
    %v120 = vld [vmem:[%s2 + $0x10] sm:$0xf]
    %v121 = vld [vmem:[%s2 + $0x14] sm:$0xf]
    %v122 = vld [vmem:[%s2 + $0x18] sm:$0xf]
    %v123 = vld [vmem:[%s2 + $0x1c] sm:$0xf]
    %125 = vset.pattern.permute.xlu0 0
    %126 = vperm.xlu0 %125, %v116
    %v127 = vpop.permute.xlu0 %126
    %v130 = vunpack.c.l.s4 839922192
    %v131 = vunpack.c.0.s8 %v130
    %v132 = vperm.slane %v127, %v131
    %134 = vset.pattern.permute.xlu0 0
    %135 = vperm.xlu0 %134, %v117
    %v136 = vpop.permute.xlu0 %135
    %v139 = vunpack.c.l.s4 839922192
    %v140 = vunpack.c.0.s8 %v139
    %v141 = vperm.slane %v136, %v140
    %143 = vset.pattern.permute.xlu0 0
    %144 = vperm.xlu0 %143, %v118
    %v145 = vpop.permute.xlu0 %144
    %v148 = vunpack.c.l.s4 839922192
    %v149 = vunpack.c.0.s8 %v148
    %v150 = vperm.slane %v145, %v149
    %152 = vset.pattern.permute.xlu0 0
    %153 = vperm.xlu0 %152, %v119
    %v154 = vpop.permute.xlu0 %153
    %v157 = vunpack.c.l.s4 839922192
    %v158 = vunpack.c.0.s8 %v157
    %v159 = vperm.slane %v154, %v158
    %161 = vset.pattern.permute.xlu0 0
    %162 = vperm.xlu0 %161, %v120
    %v163 = vpop.permute.xlu0 %162
    %v166 = vunpack.c.l.s4 839922192
    %v167 = vunpack.c.0.s8 %v166
    %v168 = vperm.slane %v163, %v167
    %170 = vset.pattern.permute.xlu0 0
    %171 = vperm.xlu0 %170, %v121
    %v172 = vpop.permute.xlu0 %171
    %v175 = vunpack.c.l.s4 839922192
    %v176 = vunpack.c.0.s8 %v175
    %v177 = vperm.slane %v172, %v176
    %179 = vset.pattern.permute.xlu0 0
    %180 = vperm.xlu0 %179, %v122
    %v181 = vpop.permute.xlu0 %180
    %v184 = vunpack.c.l.s4 839922192
    %v185 = vunpack.c.0.s8 %v184
    %v186 = vperm.slane %v181, %v185
    %188 = vset.pattern.permute.xlu0 0
    %189 = vperm.xlu0 %188, %v123
    %v190 = vpop.permute.xlu0 %189
    %v193 = vunpack.c.l.s4 839922192
    %v194 = vunpack.c.0.s8 %v193
    %v195 = vperm.slane %v190, %v194
    %v196 = vunpack.c.l.bf16 %v108
    %v197 = vunpack.c.l.bf16 %v109
    %v198 = vunpack.c.l.bf16 %v110
    %v199 = vunpack.c.l.bf16 %v111
    %v200 = vunpack.c.l.bf16 %v112
    %v201 = vunpack.c.l.bf16 %v113
    %v202 = vunpack.c.l.bf16 %v114
    %v203 = vunpack.c.l.bf16 %v115
    %v204 = vunpack.c.l.bf16 %v132
    %v205 = vunpack.c.l.bf16 %v141
    %v206 = vunpack.c.l.bf16 %v150
    %v207 = vunpack.c.l.bf16 %v159
    %v208 = vunpack.c.l.bf16 %v168
    %v209 = vunpack.c.l.bf16 %v177
    %v210 = vunpack.c.l.bf16 %v186
    %v211 = vunpack.c.l.bf16 %v195
    %v212 = vadd.f32 %v196, %v204
    %v213 = vadd.f32 %v197, %v205
    %v214 = vadd.f32 %v198, %v206
    %v215 = vadd.f32 %v199, %v207
    %v216 = vadd.f32 %v200, %v208
    %v217 = vadd.f32 %v201, %v209
    %v218 = vadd.f32 %v202, %v210
    %v219 = vadd.f32 %v203, %v211
    %v220 = vpack.c.bf16 %v212, %v212
    %v221 = vpack.c.bf16 %v213, %v213
    %v222 = vpack.c.bf16 %v214, %v214
    %v223 = vpack.c.bf16 %v215, %v215
    %v224 = vpack.c.bf16 %v216, %v216
    %v225 = vpack.c.bf16 %v217, %v217
    %v226 = vpack.c.bf16 %v218, %v218
    %v227 = vpack.c.bf16 %v219, %v219
    %v228 = vunpack.c.l.bf16 %v220
    %v229 = vunpack.c.l.bf16 %v221
    %v230 = vunpack.c.l.bf16 %v222
    %v231 = vunpack.c.l.bf16 %v223
    %v232 = vunpack.c.l.bf16 %v224
    %v233 = vunpack.c.l.bf16 %v225
    %v234 = vunpack.c.l.bf16 %v226
    %v235 = vunpack.c.l.bf16 %v227
    %v236 = vmax.f32 %v228, 0.0
    %v237 = vmax.f32 %v229, 0.0
    %v238 = vmax.f32 %v230, 0.0
    %v239 = vmax.f32 %v231, 0.0
    %v240 = vmax.f32 %v232, 0.0
    %v241 = vmax.f32 %v233, 0.0
    %v242 = vmax.f32 %v234, 0.0
    %v243 = vmax.f32 %v235, 0.0
    %v244 = vpack.c.bf16 %v237, %v236
    %v245 = vpack.c.bf16 %v239, %v238
    %v246 = vpack.c.bf16 %v241, %v240
    %v247 = vpack.c.bf16 %v243, %v242
    %v248 = vld [vmem:[%s3] sm:$0xf]
    %v249 = vld [vmem:[%s3 + $0x4] sm:$0xf]
    %v250 = vld [vmem:[%s3 + $0x8] sm:$0xf]
    %v251 = vld [vmem:[%s3 + $0xc] sm:$0xf]
    %v252 = vld [vmem:[%s4] sm:$0xff]
    %v253 = vld [vmem:[%s4 + $0x8] sm:$0xff]
    %v254 = vld [vmem:[%s4 + $0x10] sm:$0xff]
    %v255 = vld [vmem:[%s4 + $0x18] sm:$0xff]
    %257 = vset.pattern.permute.xlu0 0
    %258 = vperm.xlu0 %257, %v252
    %v259 = vpop.permute.xlu0 %258
    %262 = vset.pattern.permute.xlu0 0
    %263 = vperm.xlu0 %262, %v253
    %v264 = vpop.permute.xlu0 %263
    %267 = vset.pattern.permute.xlu0 0
    %268 = vperm.xlu0 %267, %v254
    %v269 = vpop.permute.xlu0 %268
    %272 = vset.pattern.permute.xlu0 0
    %273 = vperm.xlu0 %272, %v255
    %v274 = vpop.permute.xlu0 %273
    %v280 = vunpack.c.l.b16 %v248
    %v281 = vunpack.c.l.b16 %v249
    %v282 = vunpack.c.l.b16 %v250
    %v283 = vunpack.c.l.b16 %v251
    %v284 = vpack.c.b16 %v281, %v280
    %v285 = vpack.c.b16 %v283, %v282
    %vm286 = vcmask 523264
    %v288 = vsel %vm286, %v284, 0
    %v291 = vsel %vm286, %v285, 0
    %293 = vmatpush.bf16.msra.mxu0 0
    %294 = vmatpush.bf16.msra.mxu0 0
    %295 = vmatpush.bf16.msra.mxu0 0
    %296 = vmatpush.bf16.msra.mxu0 0
    %297 = vmatpush.bf16.msra.mxu0 %v247
    %298 = vmatpush.bf16.msra.mxu0 %v246
    %299 = vmatpush.bf16.msra.mxu0 %v245
    %300 = vmatpush.bf16.msra.mxu0 %v244
    %301 = vmatmul.bf16.gmra.mxu0 %v288
    %v302 = vpop.f32.mrf.mxu0
    %v303 = vadd.f32 %v259, %v302
    %v304 = vpop.f32.mrf.mxu0
    %v305 = vadd.f32 %v264, %v304
    %306 = vmatmul.bf16.gmra.mxu0 %v291
    %v307 = vpop.f32.mrf.mxu0
    %v308 = vadd.f32 %v269, %v307
    %v309 = vpop.f32.mrf.mxu0
    %v310 = vadd.f32 %v274, %v309
    %311 = vdwg.mxu0
    %v312 = vmax.f32 %v303, 0.0
    %v313 = vmax.f32 %v305, 0.0
    %v314 = vmax.f32 %v308, 0.0
    %v315 = vmax.f32 %v310, 0.0
    %v316 = vld [vmem:[%s5] sm:$0xff]
    %v317 = vld [vmem:[%s5 + $0x8] sm:$0xff]
    %v318 = vld [vmem:[%s5 + $0x10] sm:$0xff]
    %v319 = vld [vmem:[%s5 + $0x18] sm:$0xff]
    %321 = vset.pattern.permute.xlu0 0
    %322 = vperm.xlu0 %321, %v316
    %v323 = vpop.permute.xlu0 %322
    %326 = vset.pattern.permute.xlu0 0
    %327 = vperm.xlu0 %326, %v317
    %v328 = vpop.permute.xlu0 %327
    %331 = vset.pattern.permute.xlu0 0
    %332 = vperm.xlu0 %331, %v318
    %v333 = vpop.permute.xlu0 %332
    %336 = vset.pattern.permute.xlu0 0
    %337 = vperm.xlu0 %336, %v319
    %v338 = vpop.permute.xlu0 %337
    %v340 = vmul.f32 %v323, %v312
    %v341 = vmul.f32 %v328, %v313
    %v342 = vmul.f32 %v333, %v314
    %v343 = vmul.f32 %v338, %v315
    %v344 = vadd.f32 %v340, %v341
    %v345 = vadd.f32 %v344, %v342
    %v346 = vadd.f32 %v345, %v343
    %v347 = vrot.slane %v346, 4
    %v348 = vadd.f32 %v346, %v347
    %v349 = vrot.slane %v348, 2
    %v350 = vadd.f32 %v348, %v349
    %v351 = vrot.slane %v350, 1
    %v352 = vadd.f32 %v350, %v351
    %v353 = vld [vmem:[#allocation2] sm:$0x1]
    %355 = vset.pattern.permute.xlu0 0
    %356 = vperm.xlu0 %355, %v353
    %v357 = vpop.permute.xlu0 %356
    %v359 = vperm.slane %v357, 0
    %v360 = vadd.f32 %v352, %v359
    %361 = vst [vmem:[#allocation3] sm:$0x1] %v360
    // Predicated region
    $region30: #{tpu_custom_call.1} parent=1 // pred_check
      _
    $region31: #{tpu_custom_call.1} parent=1 // pred_check_branch
      %363 = sbr.rel (0) target = $region33
    $region32: #{tpu_custom_call.1} parent=1 // pred_region
      %365 = vsyncadd [#allocation4], 0
      %s367 = sshll.u32 [#allocation3], 4
      %s368 = int_to_ptr.vmem [resolvable:$true] %s367
      %s369 = sshll.u32 %s7, 4
      %s370 = int_to_ptr.hbm [resolvable:$true] %s369
      %372 = dma.vmem_to_hbm [thread:$0]  %s368, 16, %s370, [#allocation4]
    $region33: #{tpu_custom_call.1} parent=1 // pred_fallthru
      _
    // Predicated region
    $region34: #{tpu_custom_call.1} parent=1 // pred_check
      _
    $region35: #{tpu_custom_call.1} parent=1 // pred_check_branch
      %374 = sbr.rel (0) target = $region37
    $region36: #{tpu_custom_call.1} parent=1 // pred_region
      %376 = dma.done [#allocation4], 16
    $region37: #{tpu_custom_call.1} parent=1 // pred_fallthru
      _
    %377 = vsyncpa [#allocation4], 1

</llo_original>
